<compile_context>
chip_gen: v7x
topology: tpu7x:2x2x1
jax: 0.10.0
libtpu: 0.0.40
codegen_flags: <defaults>
</compile_context>

<pallas_src>
import jax
import jax.numpy as jnp
from jax import lax
from jax.experimental import pallas as pl
from jax.experimental.pallas import tpu as pltpu


# ----------------------------------------------------------------------------
# Kernel body (pure elementwise VPU/EUP work on real/imag planes)
# ----------------------------------------------------------------------------
def _crm_kernel(re_ref, im_ref, out_re_ref, out_im_ref):
    re = re_ref[...]
    im = im_ref[...]
    msq = re * re + im * im            # |z|^2                      (VPU)
    inv = lax.rsqrt(msq)               # 1/|z|                      (EUP, exact rsqrt)
    mag = msq * inv                    # |z|  (NaN at z==0, matches PyTorch 0/0)
    scale = jax.nn.sigmoid(mag) * inv  # sigmoid(|z|)/|z|           (EUP exp + recip)
    out_re_ref[...] = re * scale
    out_im_ref[...] = im * scale


# ----------------------------------------------------------------------------
# Launch helpers
# ----------------------------------------------------------------------------
_SMALL_PLANE_BYTES = 2 * 1024 * 1024      # per-plane size below which we go gridless
_TARGET_BLOCK_BYTES = 1 << 20             # ~1 MiB per block per array for the tiled path


def _lane_dense_2d(total_elems: int):
    """Pick a lane-dense (M, N) layout: N a large multiple of 128, M a multiple of 8."""
    for n in (1024, 512, 256, 128):
        if total_elems % n == 0 and (total_elems // n) % 8 == 0:
            return total_elems // n, n
    for n in (1024, 512, 256, 128):       # relax the sublane constraint
        if total_elems % n == 0:
            return total_elems // n, n
    return 1, total_elems                 # ragged fallback: full-array block (correct, slower stores)


def _crm_2d(re2d: jax.Array, im2d: jax.Array):
    M, N = re2d.shape
    out_shape = (
        jax.ShapeDtypeStruct((M, N), jnp.float32),
        jax.ShapeDtypeStruct((M, N), jnp.float32),
    )

    plane_bytes = M * N * 4
    if plane_bytes <= _SMALL_PLANE_BYTES:
        # Gridless: whole arrays as single VMEM blocks, no grid/pipeline scaffolding.
        return pl.pallas_call(_crm_kernel, out_shape=out_shape)(re2d, im2d)

    # Large-input path: 1-D row-tiled grid, parallel across TensorCores.
    rows_per_block = max(8, ((_TARGET_BLOCK_BYTES // (N * 4)) // 8) * 8)
    tile_m = min(M, rows_per_block)
    grid = (pl.cdiv(M, tile_m),)
    spec = pl.BlockSpec((tile_m, N), lambda i: (i, 0))
    return pl.pallas_call(
        _crm_kernel,
        out_shape=out_shape,
        grid=grid,
        in_specs=[spec, spec],
        out_specs=(spec, spec),
        compiler_params=pltpu.CompilerParams(
            dimension_semantics=("parallel",),
        ),
    )(re2d, im2d)


# ----------------------------------------------------------------------------
# Public API
# ----------------------------------------------------------------------------
def complex_ratio_mask_planes(re: jax.Array, im: jax.Array):
    """CRM on separate real/imag planes (the zero-boundary-overhead path)."""
    assert re.shape == im.shape, "real/imag planes must have identical shapes"
    shape = re.shape
    re32 = jnp.asarray(re, jnp.float32)
    im32 = jnp.asarray(im, jnp.float32)
    M, N = _lane_dense_2d(re32.size)
    out_re, out_im = _crm_2d(re32.reshape(M, N), im32.reshape(M, N))
    return out_re.reshape(shape), out_im.reshape(shape)


@jax.jit
def complex_ratio_mask(z: jax.Array) -> jax.Array:
    """Mirrors the PyTorch module: complex input -> sigmoid(|z|) * z / |z|.

    NOTE: Mosaic does not support complex dtypes and XLA cannot bitcast
    complex64 <-> float32, so the split/recombine here is the unavoidable
    boundary cost of a complex-valued interface; prefer
    `complex_ratio_mask_planes` when re/im are already stored separately.
    """
    re = jnp.real(z)
    im = jnp.imag(z)
    out_re, out_im = complex_ratio_mask_planes(re, im)
    return lax.complex(out_re, out_im).astype(z.dtype)


# ----------------------------------------------------------------------------
# Self-test
# ----------------------------------------------------------------------------
if __name__ == "__main__":
    key = jax.random.PRNGKey(0)
    k_re, k_im = jax.random.split(key)
    B, C, H, W = 2, 4, 16, 16
    re = jax.random.normal(k_re, (B, C, H, W), dtype=jnp.float32)
    im = jax.random.normal(k_im, (B, C, H, W), dtype=jnp.float32)
    z = lax.complex(re, im)

    out = complex_ratio_mask(z)
    jax.block_until_ready(out)

    # Reference in plain JAX (mirrors the PyTorch forward exactly).
    mag = jnp.abs(z)
    ref = jax.nn.sigmoid(mag) * (z / mag)
    assert jnp.allclose(out, ref, atol=1e-5, rtol=1e-5), "mismatch vs reference"

    print("KERNEL_OK")
</pallas_src>

<mosaic_0001>
module attributes {stable_mosaic.version = 11 : i64} {
  func.func @_crm_kernel(%arg0: memref<8x256xf32, #tpu.memory_space<vmem>>, %arg1: memref<8x256xf32, #tpu.memory_space<vmem>>, %arg2: memref<8x256xf32, #tpu.memory_space<vmem>>, %arg3: memref<8x256xf32, #tpu.memory_space<vmem>>) attributes {dimension_semantics = [], scalar_prefetch = 0 : i64, scratch_operands = 0 : i64, tpu.core_type = #tpu.core_type<tc>} {
    %c0 = arith.constant 0 : index
    %c0_0 = arith.constant 0 : index
    %0 = vector.load %arg0[%c0, %c0_0] : memref<8x256xf32, #tpu.memory_space<vmem>>, vector<8x256xf32>
    %c0_1 = arith.constant 0 : index
    %c0_2 = arith.constant 0 : index
    %1 = vector.load %arg1[%c0_1, %c0_2] : memref<8x256xf32, #tpu.memory_space<vmem>>, vector<8x256xf32>
    %2 = arith.mulf %0, %0 : vector<8x256xf32>
    %3 = arith.mulf %1, %1 : vector<8x256xf32>
    %4 = arith.addf %2, %3 : vector<8x256xf32>
    %5 = math.rsqrt %4 : vector<8x256xf32>
    %6 = arith.mulf %4, %5 : vector<8x256xf32>
    %7 = arith.negf %6 : vector<8x256xf32>
    %8 = math.exp %7 : vector<8x256xf32>
    %cst = arith.constant 1.000000e+00 : f32
    %9 = vector.broadcast %cst : f32 to vector<8x256xf32>
    %10 = arith.addf %9, %8 : vector<8x256xf32>
    %11 = arith.divf %9, %10 : vector<8x256xf32>
    %12 = arith.mulf %11, %5 : vector<8x256xf32>
    %13 = arith.mulf %0, %12 : vector<8x256xf32>
    %c0_3 = arith.constant 0 : index
    %c0_4 = arith.constant 0 : index
    %14 = vector.load %arg2[%c0_3, %c0_4] : memref<8x256xf32, #tpu.memory_space<vmem>>, vector<8x256xf32>
    tpu.vector_store %arg2[%c0_3, %c0_4], %13 {strides = array<i32>} : memref<8x256xf32, #tpu.memory_space<vmem>>, vector<8x256xf32>,
    %15 = arith.mulf %1, %12 : vector<8x256xf32>
    %c0_5 = arith.constant 0 : index
    %c0_6 = arith.constant 0 : index
    %16 = vector.load %arg3[%c0_5, %c0_6] : memref<8x256xf32, #tpu.memory_space<vmem>>, vector<8x256xf32>
    tpu.vector_store %arg3[%c0_5, %c0_6], %15 {strides = array<i32>} : memref<8x256xf32, #tpu.memory_space<vmem>>, vector<8x256xf32>,
    return
  }
}

</mosaic_0001>

<llo_original>
// kernel: custom-call.1
$region0: #{custom-call.1}
  %s0 = inlined_call_operand.hbm [shape: c64[2,4,16,16], index: 0, kind: input, shape index: {}]
  %s1 = inlined_call_operand.vmem [shape: f32[2,4,16,16], index: 1, kind: output, shape index: {}]
  %s2 = scalar_lea.hbm %s0, 2048
  $region1: #{custom-call.1} parent=0
    #allocation0 [shape = 's32[1]{0}', space=sflag, size = 0x4, scoped, tag = 'scoped memory for custom-call.1']
    %3 = vsyncpa [#allocation0], 0
    %s4 = sshll.u32 %s1, 4
    %s5 = int_to_ptr.vmem [resolvable:$true] %s4
    %7 = dma.hbm_to_vmem [thread:$0]  %s2, 2048, %s5, [#allocation0]
    %8 = dma.done [#allocation0], 2048
    %9 = vsyncpa [#allocation0], 1

// kernel: custom-call
$region0: #{custom-call}
  %s0 = inlined_call_operand.hbm [shape: c64[2,4,16,16], index: 0, kind: input, shape index: {}]
  %s1 = inlined_call_operand.vmem [shape: f32[2,4,16,16], index: 1, kind: output, shape index: {}]
  $region1: #{custom-call} parent=0
    #allocation0 [shape = 's32[1]{0}', space=sflag, size = 0x4, scoped, tag = 'scoped memory for custom-call']
    %2 = vsyncpa [#allocation0], 0
    %s3 = sshll.u32 %s1, 4
    %s4 = int_to_ptr.vmem [resolvable:$true] %s3
    %6 = dma.hbm_to_vmem [thread:$0]  %s0, 2048, %s4, [#allocation0]
    %7 = dma.done [#allocation0], 2048
    %8 = vsyncpa [#allocation0], 1

// kernel: custom-call.2
$region0: #{custom-call.2}
  %s0 = inlined_call_operand.vmem [shape: f32[2,4,16,16], index: 0, kind: input, shape index: {}]
  %s1 = inlined_call_operand.vmem [shape: f32[2,4,16,16], index: 1, kind: input, shape index: {}]
  %s2 = inlined_call_operand.hbm [shape: c64[2,4,16,16], index: 2, kind: output, shape index: {}]
  %s3 = scalar_lea.hbm %s2, 2048
  $region1: #{custom-call.2} parent=0
    #allocation0 [shape = 's32[1]{0}', space=sflag, size = 0x4, scoped, tag = 'scoped memory for custom-call.2']
    %4 = vsyncpa [#allocation0], 0
    %s5 = sshll.u32 %s0, 4
    %s6 = int_to_ptr.vmem [resolvable:$true] %s5
    %8 = dma.vmem_to_hbm [thread:$0]  %s6, 2048, %s2, [#allocation0]
    %9 = dma.done [#allocation0], 2048
    %10 = vsyncpa [#allocation0], 1
  $region2: #{custom-call.2} parent=0
    #allocation1 [shape = 's32[1]{0}', space=sflag, size = 0x4, scoped, tag = 'scoped memory for custom-call.2']
    %11 = vsyncpa [#allocation1], 0
    %s12 = sshll.u32 %s1, 4
    %s13 = int_to_ptr.vmem [resolvable:$true] %s12
    %15 = dma.vmem_to_hbm [thread:$0]  %s13, 2048, %s3, [#allocation1]
    %16 = dma.done [#allocation1], 2048
    %17 = vsyncpa [#allocation1], 1

// kernel: complex_ratio_mask.1
$region0: #{complex_ratio_mask.1}
  #allocation0 [shape = 'u32[]', space=smem, size = 0x4, offset = 0x4, fixed_abs, tag = 'smem constant byte address 0x4 - core index']
  #allocation1 [shape = 'u32[144,128]{1,0:T(1,128)}', space=vmem, size = 0x12000, scoped, tag = 'internal scratch']
  %s0 = inlined_call_operand.vmem [shape: f32[8,256], index: 0, kind: input, shape index: {}]
  %s1 = inlined_call_operand.vmem [shape: f32[8,256], index: 1, kind: input, shape index: {}]
  %s2 = inlined_call_operand.vmem [shape: f32[8,256], index: 2, kind: output, shape index: {0}]
  %s3 = inlined_call_operand.vmem [shape: f32[8,256], index: 3, kind: output, shape index: {1}]
  %4 = xla_tuple %s2, %s3
  %s5 = sld [smem:[#allocation0]]
  $region26: #{complex_ratio_mask.1} parent=0
    _
  %s7 = ssub.s32 1, %s5
  %s8 = scalar_select 0, %s7, %s5
  // Predicated region
  $region2: #{complex_ratio_mask.1} parent=0 // pred_check
    _
  $region3: #{complex_ratio_mask.1} parent=0 // pred_check_branch
    %10 = sbr.rel (0) target = $region5
  $region4: #{complex_ratio_mask.1} parent=0 // pred_region
    _
  $region5: #{complex_ratio_mask.1} parent=0 // pred_fallthru
    _
  // Predicated region
  $region6: #{complex_ratio_mask.1} parent=0 // pred_check
    _
  $region7: #{complex_ratio_mask.1} parent=0 // pred_check_branch
    %12 = sbr.rel (0) target = $region9
  $region8: #{complex_ratio_mask.1} parent=0 // pred_region
    _
  $region9: #{complex_ratio_mask.1} parent=0 // pred_fallthru
    _
  %v13 = vld [vmem:[%s0] sm:$0xff]
  %v14 = vld [vmem:[%s0 + $0x8] sm:$0xff]
  %v15 = vld [vmem:[%s1] sm:$0xff]
  %v16 = vld [vmem:[%s1 + $0x8] sm:$0xff]
  %v17 = vmul.f32 %v13, %v13
  %v18 = vmul.f32 %v14, %v14
  %v19 = vmul.f32 %v15, %v15
  %v20 = vmul.f32 %v16, %v16
  %v21 = vadd.f32 %v17, %v19
  %v22 = vadd.f32 %v18, %v20
  %v23 = vrsqrt.pop %v21
  %v24 = vrsqrt.pop %v22
  %v25 = vmul.f32 %v21, %v23
  %v26 = vmul.f32 %v22, %v24
  %v27 = vxor.u32 %v25, 2147483648
  %v28 = vxor.u32 %v26, 2147483648
  %v29 = vmul.f32 %v27, 1.442695
  %v30 = vpow.pop %v29
  %v31 = vmul.f32 %v28, 1.442695
  %v32 = vpow.pop %v31
  %v33 = vadd.f32 %v30, 1.0
  %v34 = vadd.f32 %v32, 1.0
  %v35 = vrcp.pop %v33
  %v36 = vmul.f32 1.0, %v35
  %v37 = vrcp.pop %v34
  %v38 = vmul.f32 1.0, %v37
  %v39 = vmul.f32 %v36, %v23
  %v40 = vmul.f32 %v38, %v24
  %v41 = vmul.f32 %v13, %v39
  %v42 = vmul.f32 %v14, %v40
  %43 = vst [vmem:[%s2] sm:$0xff] %v41
  %44 = vst [vmem:[%s2 + $0x8] sm:$0xff] %v42
  %v45 = vmul.f32 %v15, %v39
  %v46 = vmul.f32 %v16, %v40
  %47 = vst [vmem:[%s3] sm:$0xff] %v45
  %48 = vst [vmem:[%s3 + $0x8] sm:$0xff] %v46
  // Predicated region
  $region10: #{complex_ratio_mask.1} parent=0 // pred_check
    _
  $region11: #{complex_ratio_mask.1} parent=0 // pred_check_branch
    %50 = sbr.rel (0) target = $region13
  $region12: #{complex_ratio_mask.1} parent=0 // pred_region
    _
  $region13: #{complex_ratio_mask.1} parent=0 // pred_fallthru
    _
  // Predicated region
  $region14: #{complex_ratio_mask.1} parent=0 // pred_check
    _
  $region15: #{complex_ratio_mask.1} parent=0 // pred_check_branch
    %52 = sbr.rel (0) target = $region17
  $region16: #{complex_ratio_mask.1} parent=0 // pred_region
    _
  $region17: #{complex_ratio_mask.1} parent=0 // pred_fallthru
    _
  // Predicated region
  $region18: #{complex_ratio_mask.1} parent=0 // pred_check
    _
  $region19: #{complex_ratio_mask.1} parent=0 // pred_check_branch
    %54 = sbr.rel (0) target = $region21
  $region20: #{complex_ratio_mask.1} parent=0 // pred_region
    _
  $region21: #{complex_ratio_mask.1} parent=0 // pred_fallthru
    _
  // Predicated region
  $region22: #{complex_ratio_mask.1} parent=0 // pred_check
    _
  $region23: #{complex_ratio_mask.1} parent=0 // pred_check_branch
    %56 = sbr.rel (0) target = $region25
  $region24: #{complex_ratio_mask.1} parent=0 // pred_region
    _
  $region25: #{complex_ratio_mask.1} parent=0 // pred_fallthru
    _

</llo_original>
